<compile_context>
chip_gen: v6e
topology: v6e:2x2x1
jax: 0.10.0
libtpu: 0.0.40
codegen_flags: <defaults>
</compile_context>

<pallas_src>
import functools
import math

import jax
import jax.numpy as jnp
from jax import lax
from jax.experimental import pallas as pl
from jax.experimental.pallas import tpu as pltpu


# --------------------------- Pallas kernel ----------------------------------
def _csam_kernel(x_ref, m_ref, s_ref, out_ref, *, H):
    """One block of TM rows of the (B*H, W*C) lane-dense activation array.

    x_ref : (TM, WC) input rows (row = b*H + h, lane = w*C + c)
    m_ref : (3, WC, WC) banded weight matrices, slice kh <-> dh = kh - 1
    s_ref : (2,) f32 in SMEM = [conv bias, gamma]
    """
    TM, WC = x_ref.shape
    f32 = jnp.float32

    x = x_ref[...].astype(f32)                                   # (TM, WC)

    # h index of each row within its sample (TM % H == 0, block starts at a
    # multiple of H, so the in-block iota gives the true h).  Hoisted masks:
    # only two of them, instead of per-tap border math.
    h_idx = lax.broadcasted_iota(jnp.int32, (TM, WC), 0) % H

    # dh = 0 : no roll, no mask.
    conv = jnp.dot(x, m_ref[1], preferred_element_type=f32)

    # dh = -1 : needs row h-1 of the same sample -> valid when h >= 1.
    x_up = jnp.where(h_idx >= 1, pltpu.roll(x, 1, axis=0), 0.0)
    conv = conv + jnp.dot(x_up, m_ref[0], preferred_element_type=f32)

    # dh = +1 : needs row h+1 of the same sample -> valid when h <= H-2.
    x_dn = jnp.where(h_idx <= H - 2, pltpu.roll(x, TM - 1, axis=0), 0.0)
    conv = conv + jnp.dot(x_dn, m_ref[2], preferred_element_type=f32)

    conv = conv + s_ref[0]                                       # conv bias

    # gamma * sigmoid(conv); reciprocal on the EUP (free slot), gamma folded
    # into the gating multiply.
    att = s_ref[1] * pl.reciprocal(1.0 + jnp.exp(-conv), approx=True)
    out_ref[...] = (x * (att + 1.0)).astype(out_ref.dtype)       # x*att + x


# --------------------------- host-side helpers -------------------------------
def _build_banded_weights(weight, C, W):
    """Fold the (dw, dc) lane-dimension stencil (incl. zero-pad borders) into
    three (W*C, W*C) banded matrices, one per dh.  conv_rows = X_dh @ M[dh+1].
    weight: (3, 3, 3) Conv3d(1,1,3) kernel indexed [dc+1, dh+1, dw+1]."""
    WC = W * C
    lp = jnp.arange(WC)               # output lane l' = w'*C + c'
    wp, cp = lp // C, lp % C
    w = weight.astype(jnp.float32)

    M = jnp.zeros((3, WC, WC), jnp.float32)
    for kh in range(3):                               # dh slice
        dh = kh - 1
        for kw in range(3):
            dw = kw - 1
            for kd in range(3):
                dc = kd - 1
                src = lp + dw * C + dc                # input lane l
                valid = ((wp + dw >= 0) & (wp + dw < W) &
                         (cp + dc >= 0) & (cp + dc < C))
                vals = jnp.where(valid, w[kd, kh, kw], 0.0)
                M = M.at[kh, jnp.clip(src, 0, WC - 1), lp].add(vals)
        del dh
    return M


def _pick_block_rows(rows_total, H, wc, target_bytes=1 << 20):
    """Rows per grid step: multiple of H (roll containment) and of 8 (sublane
    rule), divides rows_total, ~target_bytes per f32 input block, and prefers
    >=2 grid steps so both v7x TensorCores get work."""
    step = (H * 8) // math.gcd(H, 8)
    cap = max(step, ((target_bytes // (wc * 4)) // step) * step)
    best = None
    tm = step
    while tm <= min(rows_total, cap):
        if rows_total % tm == 0:
            best = tm
        tm += step
    if best is None:
        return rows_total                      # whole array as one block
    if rows_total // best == 1 and best > step:
        tm = best - step
        while tm >= step:
            if rows_total % tm == 0:
                return tm
            tm -= step
    return best


# --------------------------- public wrappers ---------------------------------
def csam_pallas_nhwc(x_nhwc, weight, bias, gamma, *, block_rows=None):
    """Transpose-free lane-dense path.  x_nhwc: (B, H, W, C)."""
    B, H, W, C = x_nhwc.shape
    WC = W * C
    rows = B * H

    x2 = x_nhwc.reshape(rows, WC)                       # pure view, no copy
    M = _build_banded_weights(weight, C, W)             # (3, WC, WC)
    scalars = jnp.concatenate(
        [jnp.reshape(bias, (1,)), jnp.reshape(gamma, (1,))]).astype(jnp.float32)

    TM = block_rows if block_rows is not None else _pick_block_rows(rows, H, WC)
    grid = (rows // TM,)

    cost = pl.CostEstimate(
        flops=int(2 * 3 * rows * WC * WC + 8 * rows * WC),
        transcendentals=int(2 * rows * WC),
        bytes_accessed=int(4 * (2 * rows * WC + 3 * WC * WC + 2)),
    )

    kernel = functools.partial(_csam_kernel, H=H)
    out = pl.pallas_call(
        kernel,
        out_shape=jax.ShapeDtypeStruct((rows, WC), x_nhwc.dtype),
        grid=grid,
        in_specs=[
            pl.BlockSpec((TM, WC), lambda i: (i, 0)),           # activations
            pl.BlockSpec((3, WC, WC), lambda i: (0, 0, 0)),     # banded weights
            pl.BlockSpec(memory_space=pltpu.MemorySpace.SMEM),  # [bias, gamma]
        ],
        out_specs=pl.BlockSpec((TM, WC), lambda i: (i, 0)),
        compiler_params=pltpu.CompilerParams(dimension_semantics=("parallel",)),
        cost_estimate=cost,
    )(x2, M, scalars)

    return out.reshape(B, H, W, C)


def csam_pallas(x_nchw, weight, bias, gamma):
    """NCHW adapter for parity with the PyTorch module.  In a real model keep
    activations NHWC end-to-end and call csam_pallas_nhwc directly so these two
    full-tensor HBM transposes disappear (perf review item 4)."""
    y = csam_pallas_nhwc(jnp.transpose(x_nchw, (0, 2, 3, 1)), weight, bias, gamma)
    return jnp.transpose(y, (0, 3, 1, 2))


# ------------------------- pure-JAX reference -------------------------------
def csam_ref(x, weight, bias, gamma):
    B, C, H, W = x.shape
    xp = jnp.pad(x, ((0, 0), (1, 1), (1, 1), (1, 1)))
    conv = jnp.zeros_like(x)
    for kd in range(3):
        for kh in range(3):
            for kw in range(3):
                conv = conv + weight[kd, kh, kw] * xp[:, kd:kd + C, kh:kh + H, kw:kw + W]
    conv = conv + bias[0]
    att = gamma[0] * (1.0 / (1.0 + jnp.exp(-conv)))
    return x * att + x


if __name__ == "__main__":
    # Small shapes consistent with the module: (B, C, H, W) = (2, 8, 16, 16)
    # so the lane-dense width is W*C = 128 and rows B*H = 32 (2 grid steps).
    B, C, H, W = 2, 8, 16, 16

    key = jax.random.PRNGKey(0)
    k1, k2, k3 = jax.random.split(key, 3)
    x = jax.random.normal(k1, (B, C, H, W), jnp.float32)
    weight = 0.2 * jax.random.normal(k2, (3, 3, 3), jnp.float32)   # Conv3d(1,1,3)
    bias = 0.1 * jax.random.normal(k3, (1,), jnp.float32)          # Conv3d bias
    gamma = jnp.array([0.5], jnp.float32)                          # initial_gamma

    out = jax.block_until_ready(csam_pallas(x, weight, bias, gamma))
    ref = csam_ref(x, weight, bias, gamma)

    assert out.shape == (B, C, H, W)
    # Tolerance allows for MXU matmul pass precision + approx EUP reciprocal.
    if not jnp.allclose(out, ref, atol=5e-3, rtol=5e-3):
        raise AssertionError(
            f"mismatch vs reference, max abs err = {float(jnp.max(jnp.abs(out - ref)))}")
    print("KERNEL_OK")
</pallas_src>

<mosaic_0001>
module attributes {stable_mosaic.version = 11 : i64} {
  func.func @_csam_kernel(%arg0: i32, %arg1: memref<16x128xf32, #tpu.memory_space<vmem>>, %arg2: memref<3x128x128xf32, #tpu.memory_space<vmem>>, %arg3: memref<2xf32, #tpu.memory_space<smem>>, %arg4: memref<16x128xf32, #tpu.memory_space<vmem>>) attributes {dimension_semantics = [#tpu.dimension_semantics<parallel>], iteration_bounds = array<i64: 2>, scalar_prefetch = 0 : i64, scratch_operands = 0 : i64, tpu.core_type = #tpu.core_type<tc>, window_params = [{transform_indices = @transform_0, window_bounds = array<i64: 16, 128>}, {pipeline_mode = #tpu.pipeline_mode<synchronous>, transform_indices = @transform_1, window_bounds = array<i64: 3, 128, 128>}, {transform_indices = @transform_2, window_bounds = array<i64: 2>}, {transform_indices = @transform_3, window_bounds = array<i64: 16, 128>}]} {
    %c0 = arith.constant 0 : index
    %c0_0 = arith.constant 0 : index
    %0 = vector.load %arg1[%c0, %c0_0] : memref<16x128xf32, #tpu.memory_space<vmem>>, vector<16x128xf32>
    %1 = tpu.iota {dimensions = array<i32: 0>} : vector<16x128xi32>
    %c16_i32 = arith.constant 16 : i32
    %c0_i32 = arith.constant 0 : i32
    %2 = arith.cmpi eq, %c16_i32, %c0_i32 : i32
    %c1_i32 = arith.constant 1 : i32
    %3 = arith.select %2, %c1_i32, %c16_i32 : i32
    %4 = vector.broadcast %3 : i32 to vector<16x128xi32>
    %5 = arith.remsi %1, %4 : vector<16x128xi32>
    %c0_i32_1 = arith.constant 0 : i32
    %6 = vector.broadcast %c0_i32_1 : i32 to vector<16x128xi32>
    %7 = arith.cmpi ne, %5, %6 : vector<16x128xi32>
    %c0_i32_2 = arith.constant 0 : i32
    %8 = vector.broadcast %c0_i32_2 : i32 to vector<16x128xi32>
    %9 = arith.cmpi slt, %5, %8 : vector<16x128xi32>
    %c0_i32_3 = arith.constant 0 : i32
    %10 = arith.cmpi slt, %3, %c0_i32_3 : i32
    %11 = vector.broadcast %10 : i1 to vector<16x128xi1>
    %12 = vector.broadcast %11 : vector<16x128xi1> to vector<16x128xi1>
    %13 = arith.xori %9, %12 : vector<16x128xi1>
    %14 = arith.andi %13, %7 : vector<16x128xi1>
    %15 = vector.broadcast %3 : i32 to vector<16x128xi32>
    %16 = arith.addi %5, %15 : vector<16x128xi32>
    %17 = arith.select %14, %16, %5 : vector<16x128xi1>, vector<16x128xi32>
    %c1 = arith.constant 1 : index
    %c0_4 = arith.constant 0 : index
    %c0_5 = arith.constant 0 : index
    %18 = vector.load %arg2[%c1, %c0_4, %c0_5] : memref<3x128x128xf32, #tpu.memory_space<vmem>>, vector<1x128x128xf32>
    %19 = vector.shape_cast %18 : vector<1x128x128xf32> to vector<128x128xf32>
    %cst = arith.constant dense<0.000000e+00> : vector<16x128xf32>
    %20 = tpu.matmul %0, %19, %cst {dimension_numbers = #tpu.dot_dimension_numbers<[1], [0], [0], [1], [0, 0, 1, 1], [], []>} : vector<16x128xf32>, vector<128x128xf32>, vector<16x128xf32> -> vector<16x128xf32>
    %c1_i32_6 = arith.constant 1 : i32
    %21 = vector.broadcast %c1_i32_6 : i32 to vector<16x128xi32>
    %22 = arith.cmpi sge, %17, %21 : vector<16x128xi32>
    %c1_i32_7 = arith.constant 1 : i32
    %23 = tpu.dynamic_rotate %0 by %c1_i32_7 dim 0 : vector<16x128xf32>, i32 -> vector<16x128xf32>
    %cst_8 = arith.constant 0.000000e+00 : f32
    %24 = vector.broadcast %cst_8 : f32 to vector<16x128xf32>
    %25 = arith.select %22, %23, %24 : vector<16x128xi1>, vector<16x128xf32>
    %c0_9 = arith.constant 0 : index
    %c0_10 = arith.constant 0 : index
    %c0_11 = arith.constant 0 : index
    %26 = vector.load %arg2[%c0_9, %c0_10, %c0_11] : memref<3x128x128xf32, #tpu.memory_space<vmem>>, vector<1x128x128xf32>
    %27 = vector.shape_cast %26 : vector<1x128x128xf32> to vector<128x128xf32>
    %cst_12 = arith.constant dense<0.000000e+00> : vector<16x128xf32>
    %28 = tpu.matmul %25, %27, %cst_12 {dimension_numbers = #tpu.dot_dimension_numbers<[1], [0], [0], [1], [0, 0, 1, 1], [], []>} : vector<16x128xf32>, vector<128x128xf32>, vector<16x128xf32> -> vector<16x128xf32>
    %29 = arith.addf %20, %28 : vector<16x128xf32>
    %c14_i32 = arith.constant 14 : i32
    %30 = vector.broadcast %c14_i32 : i32 to vector<16x128xi32>
    %31 = arith.cmpi sle, %17, %30 : vector<16x128xi32>
    %c15_i32 = arith.constant 15 : i32
    %32 = tpu.dynamic_rotate %0 by %c15_i32 dim 0 : vector<16x128xf32>, i32 -> vector<16x128xf32>
    %cst_13 = arith.constant 0.000000e+00 : f32
    %33 = vector.broadcast %cst_13 : f32 to vector<16x128xf32>
    %34 = arith.select %31, %32, %33 : vector<16x128xi1>, vector<16x128xf32>
    %c2 = arith.constant 2 : index
    %c0_14 = arith.constant 0 : index
    %c0_15 = arith.constant 0 : index
    %35 = vector.load %arg2[%c2, %c0_14, %c0_15] : memref<3x128x128xf32, #tpu.memory_space<vmem>>, vector<1x128x128xf32>
    %36 = vector.shape_cast %35 : vector<1x128x128xf32> to vector<128x128xf32>
    %cst_16 = arith.constant dense<0.000000e+00> : vector<16x128xf32>
    %37 = tpu.matmul %34, %36, %cst_16 {dimension_numbers = #tpu.dot_dimension_numbers<[1], [0], [0], [1], [0, 0, 1, 1], [], []>} : vector<16x128xf32>, vector<128x128xf32>, vector<16x128xf32> -> vector<16x128xf32>
    %38 = arith.addf %29, %37 : vector<16x128xf32>
    %c0_17 = arith.constant 0 : index
    %39 = memref.load %arg3[%c0_17] : memref<2xf32, #tpu.memory_space<smem>>
    %40 = vector.broadcast %39 : f32 to vector<16x128xf32>
    %41 = arith.addf %38, %40 : vector<16x128xf32>
    %c1_18 = arith.constant 1 : index
    %42 = memref.load %arg3[%c1_18] : memref<2xf32, #tpu.memory_space<smem>>
    %cst_19 = arith.constant 0.000000e+00 : f32
    %43 = vector.broadcast %cst_19 : f32 to vector<16x128xf32>
    %44 = arith.subf %43, %41 : vector<16x128xf32>
    %45 = math.exp %44 : vector<16x128xf32>
    %cst_20 = arith.constant 1.000000e+00 : f32
    %46 = vector.broadcast %cst_20 : f32 to vector<16x128xf32>
    %47 = arith.addf %46, %45 : vector<16x128xf32>
    %48 = tpu.reciprocal %47 {approx = true} : vector<16x128xf32> -> vector<16x128xf32>
    %49 = vector.broadcast %42 : f32 to vector<16x128xf32>
    %50 = arith.mulf %49, %48 : vector<16x128xf32>
    %cst_21 = arith.constant 1.000000e+00 : f32
    %51 = vector.broadcast %cst_21 : f32 to vector<16x128xf32>
    %52 = arith.addf %50, %51 : vector<16x128xf32>
    %53 = arith.mulf %0, %52 : vector<16x128xf32>
    %c0_22 = arith.constant 0 : index
    %c0_23 = arith.constant 0 : index
    %54 = vector.load %arg4[%c0_22, %c0_23] : memref<16x128xf32, #tpu.memory_space<vmem>>, vector<16x128xf32>
    tpu.vector_store %arg4[%c0_22, %c0_23], %53 {strides = array<i32>} : memref<16x128xf32, #tpu.memory_space<vmem>>, vector<16x128xf32>,
    return
  }
  func.func @transform_0(%arg0: i32) -> (i32, i32) {
    %c0_i32 = arith.constant 0 : i32
    %c0_i32_0 = arith.constant 0 : i32
    return %arg0, %c0_i32 : i32, i32
  }
  func.func @transform_1(%arg0: i32) -> (i32, i32, i32) {
    %c0_i32 = arith.constant 0 : i32
    %c0_i32_0 = arith.constant 0 : i32
    %c0_i32_1 = arith.constant 0 : i32
    %c0_i32_2 = arith.constant 0 : i32
    return %c0_i32, %c0_i32_0, %c0_i32_1 : i32, i32, i32
  }
  func.func @transform_2(%arg0: i32) -> i32 {
    %c0_i32 = arith.constant 0 : i32
    %c0_i32_0 = arith.constant 0 : i32
    return %c0_i32 : i32
  }
  func.func @transform_3(%arg0: i32) -> (i32, i32) {
    %c0_i32 = arith.constant 0 : i32
    %c0_i32_0 = arith.constant 0 : i32
    return %arg0, %c0_i32 : i32, i32
  }
}

</mosaic_0001>

<llo_original>
// kernel: tpu_custom_call.1
$region0: #{tpu_custom_call.1}
  #allocation0 [shape = 'u32[]', space=smem, size = 0x4, offset = 0x4, fixed_abs, tag = 'smem constant byte address 0x4 - core index']
  #allocation1 [shape = 'u32[144,128]{1,0:T(1,128)}', space=vmem, size = 0x12000, scoped, tag = 'internal scratch']
  %s0 = inlined_call_operand.hbm [shape: f32[32,128], index: 0, kind: input, shape index: {}]
  %s1 = inlined_call_operand.hbm [shape: f32[3,128,128], index: 1, kind: input, shape index: {}]
  %s2 = inlined_call_operand.vmem [shape: f32[2], index: 2, kind: input, shape index: {}]
  %s3 = inlined_call_operand.hbm [shape: f32[32,128], index: 3, kind: output, shape index: {}]
  %s4 = sld [smem:[#allocation0]]
  $region57: #{tpu_custom_call.1} parent=0
    _
  %s6 = ssub.s32 1, %s4
  %s7 = scalar_select 0, %s6, %s4
  $region1: #{tpu_custom_call.1} parent=0
    #allocation2 [shape = 'u8[16384]{0}', space=vmem, size = 0x4000, scoped, tag = 'input window, operand 0']
    #allocation3 [shape = 's32[2]{0}', space=sflag, size = 0x8, scoped, tag = 'scoped memory for tpu_custom_call.1']
    #allocation4 [shape = 's32[2]{0}', space=sflag, size = 0x8, scoped, tag = 'scoped memory for tpu_custom_call.1']
    #allocation5 [shape = 's32[2]{0}', space=sflag, size = 0x8, scoped, tag = 'scoped memory for tpu_custom_call.1']
    #allocation6 [shape = 'u8[196608]{0}', space=vmem, size = 0x30000, scoped, tag = 'input window, operand 1, single buffered']
    #allocation7 [shape = 's32[1]{0}', space=sflag, size = 0x4, scoped, tag = 'scoped memory for tpu_custom_call.1']
    #allocation8 [shape = 'u8[512]{0}', space=smem, size = 0x200, scoped, tag = 'input window, operand 2, single buffered']
    #allocation9 [shape = 'u8[16384]{0}', space=vmem, size = 0x4000, scoped, tag = 'output window, operand 0']
    %8 = vsyncpa [#allocation3], 0
    %s9 = scalar_lea.sflag [#allocation3], 1
    %10 = vsyncpa %s9, 0
    %11 = vsyncpa [#allocation7], 0
    %12 = vsyncpa [#allocation5], 0
    %13 = vsyncpa [#allocation4], 0
    %s14 = scalar_lea.sflag [#allocation4], 1
    %15 = vsyncpa %s14, 0
    loop: start=0, step=1, limit=4
    $region2: #{tpu_custom_call.1} parent=1 // loop_pre_header
      _
    $region3: #{tpu_custom_call.1} parent=1 // loop_header
      %s17 = sphi 0, %s21
      %p18 = scmp.ge.s32.totalorder %s17, 4
      %s27 = sphi 0, %s29
      %s30 = sphi 0, %s27
      %s31 = sphi 0, %s30
      %s47 = sphi 0, %s31
      %s51 = sphi 0, %s51
      %s53 = sphi 0, %s51
      %s54 = sphi 0, %s53
      %s68 = sphi 0, %s54
      %s72 = sphi 0, %s72
      %s74 = sphi 0, %s72
      %s75 = sphi 0, %s74
      %s89 = sphi 0, %s75
      %s95 = sphi 0, %s97
      %s98 = sphi 0, %s95
      %s99 = sphi 0, %s98
      %s115 = sphi 0, %s99
    $region4: #{tpu_custom_call.1} parent=1 // loop_header_branch
      %20 = sbr.rel (%p18) target = $region8
    $region5: #{tpu_custom_call.1} parent=1 // loop_body
      %s22 = ssub.s32 %s17, 1
      %s23 = ssub.s32 %s17, 2
      %s24 = sadd.s32 %s17, 1
      %s25 = ssub.s32 %s17, %s24
      %p26 = scmp.eq.s32.totalorder %s25, 0
      %s28 = sadd.s32 %s27, 1
      %s29 = scalar_select %p26, %s27, %s28
      %p32 = pneg %p26
      %p33 = scmp.eq.s32.totalorder %s17, 1
      %p34 = por %p32, %p33
      %p35 = scmp.ne.s32.totalorder %s27, %s30
      %p36 = scmp.eq.s32.totalorder %s17, 0
      %p37 = por %p35, %p36
      %p38 = scmp.ne.s32.totalorder %s27, %s30
      %p39 = scmp.eq.s32.totalorder %s22, 1
      %p40 = por %p38, %p39
      %p41 = scmp.ne.s32.totalorder %s30, %s31
      %p42 = scmp.eq.s32.totalorder %s22, 0
      %p43 = por %p41, %p42
      %p44 = scmp.ne.s32.totalorder %s30, %s31
      %p45 = scmp.eq.s32.totalorder %s23, 1
      %p46 = por %p44, %p45
      %p48 = scmp.ne.s32.totalorder %s31, %s47
      %p49 = scmp.eq.s32.totalorder %s23, 0
      %p50 = por %p48, %p49
      %s52 = sadd.s32 %s51, 1
      %p55 = scmp.eq.s32.totalorder %s17, 1
      %p56 = scmp.ne.s32.totalorder %s51, %s53
      %p57 = scmp.eq.s32.totalorder %s17, 0
      %p58 = por %p56, %p57
      %p59 = scmp.ne.s32.totalorder %s51, %s53
      %p60 = scmp.eq.s32.totalorder %s22, 1
      %p61 = por %p59, %p60
      %p62 = scmp.ne.s32.totalorder %s53, %s54
      %p63 = scmp.eq.s32.totalorder %s22, 0
      %p64 = por %p62, %p63
      %p65 = scmp.ne.s32.totalorder %s53, %s54
      %p66 = scmp.eq.s32.totalorder %s23, 1
      %p67 = por %p65, %p66
      %p69 = scmp.ne.s32.totalorder %s54, %s68
      %p70 = scmp.eq.s32.totalorder %s23, 0
      %p71 = por %p69, %p70
      %s73 = sadd.s32 %s72, 1
      %p76 = scmp.eq.s32.totalorder %s17, 1
      %p77 = scmp.ne.s32.totalorder %s72, %s74
      %p78 = scmp.eq.s32.totalorder %s17, 0
      %p79 = por %p77, %p78
      %p80 = scmp.ne.s32.totalorder %s72, %s74
      %p81 = scmp.eq.s32.totalorder %s22, 1
      %p82 = por %p80, %p81
      %p83 = scmp.ne.s32.totalorder %s74, %s75
      %p84 = scmp.eq.s32.totalorder %s22, 0
      %p85 = por %p83, %p84
      %p86 = scmp.ne.s32.totalorder %s74, %s75
      %p87 = scmp.eq.s32.totalorder %s23, 1
      %p88 = por %p86, %p87
      %p90 = scmp.ne.s32.totalorder %s75, %s89
      %p91 = scmp.eq.s32.totalorder %s23, 0
      %p92 = por %p90, %p91
      %s93 = ssub.s32 %s17, %s24
      %p94 = scmp.eq.s32.totalorder %s93, 0
      %s96 = sadd.s32 %s95, 1
      %s97 = scalar_select %p94, %s95, %s96
      %p100 = pneg %p94
      %p101 = scmp.eq.s32.totalorder %s17, 1
      %p102 = por %p100, %p101
      %p103 = scmp.ne.s32.totalorder %s95, %s98
      %p104 = scmp.eq.s32.totalorder %s17, 0
      %p105 = por %p103, %p104
      %p106 = scmp.ne.s32.totalorder %s95, %s98
      %p107 = scmp.eq.s32.totalorder %s22, 1
      %p108 = por %p106, %p107
      %p109 = scmp.ne.s32.totalorder %s98, %s99
      %p110 = scmp.eq.s32.totalorder %s22, 0
      %p111 = por %p109, %p110
      %p112 = scmp.ne.s32.totalorder %s98, %s99
      %p113 = scmp.eq.s32.totalorder %s23, 1
      %p114 = por %p112, %p113
      %p116 = scmp.ne.s32.totalorder %s99, %s115
      %p117 = scmp.eq.s32.totalorder %s23, 0
      %p118 = por %p116, %p117
      %p119 = scmp.le.s32.totalorder 1, %s17
      %p120 = scmp.lt.s32.totalorder %s17, 3
      %p121 = pnand %p119, %p120
      %p122 = pneg %p121
      // Predicated region
      $region9: #{tpu_custom_call.1} parent=5 // pred_check
        _
      $region10: #{tpu_custom_call.1} parent=5 // pred_check_branch
        %124 = sbr.rel (%p121) target = $region12
      $region11: #{tpu_custom_call.1} parent=5 // pred_region
        %s125 = ssub.s32 %s17, 1
        // Predicated region
        $region13: #{tpu_custom_call.1} parent=11 // pred_check
          %p126 = pneg %p64
        $region14: #{tpu_custom_call.1} parent=11 // pred_check_branch
          %128 = sbr.rel (%p126) target = $region16
        $region15: #{tpu_custom_call.1} parent=11 // pred_region
          %s130 = ssub.s32 6144, 6144
          %131 = vsyncadd [#allocation7], %s130
          %s132 = sshll.u32 [#allocation6], 4
          %s133 = int_to_ptr.vmem [resolvable:$true] %s132
          %138 = dma.hbm_to_vmem [thread:$0]  %s1, 6144, %s133, [#allocation7], 128, 128, 8
        $region16: #{tpu_custom_call.1} parent=11 // pred_fallthru
          _
        // Predicated region
        $region17: #{tpu_custom_call.1} parent=11 // pred_check
          %p139 = pneg %p85
        $region18: #{tpu_custom_call.1} parent=11 // pred_check_branch
          %141 = sbr.rel (%p139) target = $region20
        $region19: #{tpu_custom_call.1} parent=11 // pred_region
          %s143 = ssub.s32 16, 16
          %144 = vsyncadd [#allocation5], %s143
          %s146 = sshll.u32 %s2, 4
          %s147 = int_to_ptr.vmem [resolvable:$true] %s146
          %149 = dma.vmem_to_smem %s147, 16, [#allocation8], [#allocation5]
        $region20: #{tpu_custom_call.1} parent=11 // pred_fallthru
          _
      $region12: #{tpu_custom_call.1} parent=5 // pred_fallthru
        _
      %p150 = scmp.lt.s32.totalorder %s17, 2
      // Predicated region
      $region21: #{tpu_custom_call.1} parent=5 // pred_check
        %p151 = pneg %p150
      $region22: #{tpu_custom_call.1} parent=5 // pred_check_branch
        %153 = sbr.rel (%p151) target = $region24
      $region23: #{tpu_custom_call.1} parent=5 // pred_region
        // Predicated region
        $region25: #{tpu_custom_call.1} parent=23 // pred_check
          %p154 = pneg %p37
        $region26: #{tpu_custom_call.1} parent=23 // pred_check_branch
          %156 = sbr.rel (%p154) target = $region28
        $region27: #{tpu_custom_call.1} parent=23 // pred_region
          %s157 = sand.u32 %s27, 1
          %s158 = scalar_lea.sflag [#allocation3], %s157
          %s159 = sand.u32 %s27, 1
          %s160 = smul.addr %s159, 16
          %s161 = scalar_lea.vmem [#allocation2], %s160
          %s162 = smul.u32 2, %s17
          %s164 = ssub.s32 256, 256
          %165 = vsyncadd %s158, %s164
          %s166 = smul.addr %s162, 128
          %s167 = scalar_lea.hbm %s0, %s166
          %s168 = sshll.u32 %s161, 4
          %s169 = int_to_ptr.vmem [resolvable:$true] %s168
          %174 = dma.hbm_to_vmem [thread:$0]  %s167, 256, %s169, %s158, 128, 128, 8
        $region28: #{tpu_custom_call.1} parent=23 // pred_fallthru
          _
      $region24: #{tpu_custom_call.1} parent=5 // pred_fallthru
        _
      %p175 = scmp.le.s32.totalorder 1, %s17
      %p176 = scmp.lt.s32.totalorder %s17, 3
      %p177 = pnand %p175, %p176
      %p178 = pneg %p177
      // Predicated region
      $region29: #{tpu_custom_call.1} parent=5 // pred_check
        _
      $region30: #{tpu_custom_call.1} parent=5 // pred_check_branch
        %180 = sbr.rel (%p177) target = $region32
      $region31: #{tpu_custom_call.1} parent=5 // pred_region
        %s181 = ssub.s32 %s17, 1
        %s182 = sand.u32 %s30, 1
        %s183 = scalar_lea.sflag [#allocation3], %s182
        %s184 = sand.u32 %s30, 1
        %s185 = smul.addr %s184, 16
        %s186 = scalar_lea.vmem [#allocation2], %s185
        // Predicated region
        $region33: #{tpu_custom_call.1} parent=31 // pred_check
          %p187 = pneg %p43
        $region34: #{tpu_custom_call.1} parent=31 // pred_check_branch
          %189 = sbr.rel (%p187) target = $region36
        $region35: #{tpu_custom_call.1} parent=31 // pred_region
          %190 = dma.done %s183, 256
        $region36: #{tpu_custom_call.1} parent=31 // pred_fallthru
          _
        // Predicated region
        $region37: #{tpu_custom_call.1} parent=31 // pred_check
          %p191 = pneg %p64
        $region38: #{tpu_custom_call.1} parent=31 // pred_check_branch
          %193 = sbr.rel (%p191) target = $region40
        $region39: #{tpu_custom_call.1} parent=31 // pred_region
          %194 = dma.done [#allocation7], 6144
        $region40: #{tpu_custom_call.1} parent=31 // pred_fallthru
          _
        // Predicated region
        $region41: #{tpu_custom_call.1} parent=31 // pred_check
          %p195 = pneg %p85
        $region42: #{tpu_custom_call.1} parent=31 // pred_check_branch
          %197 = sbr.rel (%p195) target = $region44
        $region43: #{tpu_custom_call.1} parent=31 // pred_region
          %198 = dma.done [#allocation5], 16
        $region44: #{tpu_custom_call.1} parent=31 // pred_fallthru
          _
        %199 = sfence
        %s200 = sand.u32 %s30, 1
        %s201 = scalar_lea.sflag [#allocation3], %s200
        %s202 = sand.u32 %s30, 1
        %s203 = smul.addr %s202, 16
        %s204 = scalar_lea.vmem [#allocation2], %s203
        %p205 = pneg %p43
        %p206 = pneg %p40
        %p207 = pneg %p64
        %p208 = pneg %p61
        %p209 = pneg %p85
        %p210 = pneg %p82
        %p211 = pneg %p111
        %p212 = pneg %p108
        %s213 = sand.u32 %s98, 1
        %s214 = scalar_lea.sflag [#allocation4], %s213
        %s215 = sand.u32 %s98, 1
        %s216 = smul.addr %s215, 16
        %s217 = scalar_lea.vmem [#allocation9], %s216
        %s218 = smul.u32 2, %s22
        %s219 = smul.u32 2, %s22
        %v220 = vld [vmem:[%s186] sm:$0xff]
        %v221 = vld [vmem:[%s186 + $0x8] sm:$0xff]
        %v222 = vlaneseq
        %v223 = vshrl.u32 %v222, 7
        %v224 = vadd.s32 %v223, 8
        %vm225 = vcmp.lt.s32.totalorder %v223, 0
        %v226 = vsub.s32 0, %v223
        %v227 = vsel %vm225, %v226, %v223
        %v228 = vshrl.u32 %v227, 4
        %v229 = vand.u32 %v227, 15
        %v230 = vsub.s32 0, %v229
        %v231 = vsel %vm225, %v230, %v229
        %vm232 = vcmp.lt.s32.totalorder %v224, 0
        %v233 = vsub.s32 0, %v224
        %v234 = vsel %vm232, %v233, %v224
        %v235 = vshrl.u32 %v234, 4
        %v236 = vand.u32 %v234, 15
        %v237 = vsub.s32 0, %v236
        %v238 = vsel %vm232, %v237, %v236
        %vm239 = vcmp.ne.s32.totalorder %v231, 0
        %vm240 = vcmp.ne.s32.totalorder %v238, 0
        %vm241 = vcmp.lt.s32.totalorder %v231, 0
        %vm242 = vcmp.lt.s32.totalorder %v238, 0
        %vm243 = vmand %vm241, %vm239
        %vm244 = vmand %vm242, %vm240
        %v245 = vadd.s32 %v231, 16
        %v246 = vadd.s32 %v238, 16
        %v247 = vsel %vm243, %v245, %v231
        %v248 = vsel %vm244, %v246, %v238
        %s249 = scalar_lea.vmem [#allocation6], 128
        %v250 = vld [vmem:[%s249] sm:$0xff]
        %v251 = vld [vmem:[%s249 + $0x8] sm:$0xff]
        %v252 = vld [vmem:[%s249 + $0x10] sm:$0xff]
        %v253 = vld [vmem:[%s249 + $0x18] sm:$0xff]
        %v254 = vld [vmem:[%s249 + $0x20] sm:$0xff]
        %v255 = vld [vmem:[%s249 + $0x28] sm:$0xff]
        %v256 = vld [vmem:[%s249 + $0x30] sm:$0xff]
        %v257 = vld [vmem:[%s249 + $0x38] sm:$0xff]
        %v258 = vld [vmem:[%s249 + $0x40] sm:$0xff]
        %v259 = vld [vmem:[%s249 + $0x48] sm:$0xff]
        %v260 = vld [vmem:[%s249 + $0x50] sm:$0xff]
        %v261 = vld [vmem:[%s249 + $0x58] sm:$0xff]
        %v262 = vld [vmem:[%s249 + $0x60] sm:$0xff]
        %v263 = vld [vmem:[%s249 + $0x68] sm:$0xff]
        %v264 = vld [vmem:[%s249 + $0x70] sm:$0xff]
        %v265 = vld [vmem:[%s249 + $0x78] sm:$0xff]
        %vm266 = vcmp.ge.s32.totalorder %v247, 1
        %vm267 = vcmp.ge.s32.totalorder %v248, 1
        %v268 = vrot.slane %v220, 7
        %v269 = vrot.slane %v221, 7
        %vm270 = vcmp.lt.s32.totalorder %v223, 1
        %v271 = vsel %vm270, %v268, %v269
        %v272 = vsel %vm270, %v269, %v268
        %v273 = vsel %vm266, %v272, 0.0
        %v274 = vsel %vm267, %v271, 0.0
        %v275 = vld [vmem:[#allocation6] sm:$0xff]
        %v276 = vld [vmem:[#allocation6 + $0x8] sm:$0xff]
        %v277 = vld [vmem:[#allocation6 + $0x10] sm:$0xff]
        %v278 = vld [vmem:[#allocation6 + $0x18] sm:$0xff]
        %v279 = vld [vmem:[#allocation6 + $0x20] sm:$0xff]
        %v280 = vld [vmem:[#allocation6 + $0x28] sm:$0xff]
        %v281 = vld [vmem:[#allocation6 + $0x30] sm:$0xff]
        %v282 = vld [vmem:[#allocation6 + $0x38] sm:$0xff]
        %v283 = vld [vmem:[#allocation6 + $0x40] sm:$0xff]
        %v284 = vld [vmem:[#allocation6 + $0x48] sm:$0xff]
        %v285 = vld [vmem:[#allocation6 + $0x50] sm:$0xff]
        %v286 = vld [vmem:[#allocation6 + $0x58] sm:$0xff]
        %v287 = vld [vmem:[#allocation6 + $0x60] sm:$0xff]
        %v288 = vld [vmem:[#allocation6 + $0x68] sm:$0xff]
        %v289 = vld [vmem:[#allocation6 + $0x70] sm:$0xff]
        %v290 = vld [vmem:[#allocation6 + $0x78] sm:$0xff]
        %291 = vmatprep.subr.mxu0 0.0
        %292 = vmatpush1.msra.mxu0 %v290
        %293 = vmatprep.subr.mxu0 0.0
        %294 = vmatpush1.msra.mxu0 %v289
        %295 = vmatprep.subr.mxu0 0.0
        %296 = vmatpush1.msra.mxu0 %v288
        %297 = vmatprep.subr.mxu0 0.0
        %298 = vmatpush1.msra.mxu0 %v287
        %299 = vmatprep.subr.mxu0 0.0
        %300 = vmatpush1.msra.mxu0 %v286
        %301 = vmatprep.subr.mxu0 0.0
        %302 = vmatpush1.msra.mxu0 %v285
        %303 = vmatprep.subr.mxu0 0.0
        %304 = vmatpush1.msra.mxu0 %v284
        %305 = vmatprep.subr.mxu0 0.0
        %306 = vmatpush1.msra.mxu0 %v283
        %307 = vmatprep.subr.mxu0 0.0
        %308 = vmatpush1.msra.mxu0 %v282
        %309 = vmatprep.subr.mxu0 0.0
        %310 = vmatpush1.msra.mxu0 %v281
        %311 = vmatprep.subr.mxu0 0.0
        %312 = vmatpush1.msra.mxu0 %v280
        %313 = vmatprep.subr.mxu0 0.0
        %314 = vmatpush1.msra.mxu0 %v279
        %315 = vmatprep.subr.mxu0 0.0
        %316 = vmatpush1.msra.mxu0 %v278
        %317 = vmatprep.subr.mxu0 0.0
        %318 = vmatpush1.msra.mxu0 %v277
        %319 = vmatprep.subr.mxu0 0.0
        %320 = vmatpush1.msra.mxu0 %v276
        %321 = vmatprep.subr.mxu0 0.0
        %322 = vmatpush1.msra.mxu0 %v275
        %323 = vmatprep.subr.mxu0 0.0
        %324 = vmatpush2.msra.mxu0 0.0
        %325 = vmatprep.subr.mxu0 0.0
        %326 = vmatpush2.msra.mxu0 0.0
        %327 = vmatprep.subr.mxu0 0.0
        %328 = vmatpush2.msra.mxu0 0.0
        %329 = vmatprep.subr.mxu0 0.0
        %330 = vmatpush2.msra.mxu0 0.0
        %331 = vmatprep.subr.mxu0 0.0
        %332 = vmatpush2.msra.mxu0 0.0
        %333 = vmatprep.subr.mxu0 0.0
        %334 = vmatpush2.msra.mxu0 0.0
        %335 = vmatprep.subr.mxu0 0.0
        %336 = vmatpush2.msra.mxu0 0.0
        %337 = vmatprep.subr.mxu0 0.0
        %338 = vmatpush2.msra.mxu0 0.0
        %339 = vmatprep.subr.mxu0 0.0
        %340 = vmatpush2.msra.mxu0 0.0
        %341 = vmatprep.subr.mxu0 0.0
        %342 = vmatpush2.msra.mxu0 0.0
        %343 = vmatprep.subr.mxu0 0.0
        %344 = vmatpush2.msra.mxu0 0.0
        %345 = vmatprep.subr.mxu0 0.0
        %346 = vmatpush2.msra.mxu0 0.0
        %347 = vmatprep.subr.mxu0 0.0
        %348 = vmatpush2.msra.mxu0 0.0
        %349 = vmatprep.subr.mxu0 0.0
        %350 = vmatpush2.msra.mxu0 0.0
        %351 = vmatprep.subr.mxu0 0.0
        %352 = vmatpush2.msra.mxu0 0.0
        %353 = vmatprep.subr.mxu0 0.0
        %354 = vmatpush2.msra.mxu0 0.0
        %355 = vmatprep.mubr.f32.mxu0 0.0
        %356 = vmatmul.mubr.f32.gmra.mxu0 %v273
        %v357 = vpop.f32.mrf.mxu0
        %v358 = vadd.f32 0.0, %v357
        %v359 = vpop.f32.mrf.mxu0
        %360 = vmatprep.mubr.f32.mxu0 0.0
        %361 = vmatmul.mubr.f32.gmra.mxu0 %v274
        %v362 = vpop.f32.mrf.mxu0
        %v363 = vadd.f32 0.0, %v362
        %v364 = vpop.f32.mrf.mxu0
        %365 = vdwg.mxu0
        %366 = vmatprep.subr.mxu0 0.0
        %367 = vmatpush1.msra.mxu0 %v265
        %368 = vmatprep.subr.mxu0 0.0
        %369 = vmatpush1.msra.mxu0 %v264
        %370 = vmatprep.subr.mxu0 0.0
        %371 = vmatpush1.msra.mxu0 %v263
        %372 = vmatprep.subr.mxu0 0.0
        %373 = vmatpush1.msra.mxu0 %v262
        %374 = vmatprep.subr.mxu0 0.0
        %375 = vmatpush1.msra.mxu0 %v261
        %376 = vmatprep.subr.mxu0 0.0
        %377 = vmatpush1.msra.mxu0 %v260
        %378 = vmatprep.subr.mxu0 0.0
        %379 = vmatpush1.msra.mxu0 %v259
        %380 = vmatprep.subr.mxu0 0.0
        %381 = vmatpush1.msra.mxu0 %v258
        %382 = vmatprep.subr.mxu0 0.0
        %383 = vmatpush1.msra.mxu0 %v257
        %384 = vmatprep.subr.mxu0 0.0
        %385 = vmatpush1.msra.mxu0 %v256
        %386 = vmatprep.subr.mxu0 0.0
        %387 = vmatpush1.msra.mxu0 %v255
        %388 = vmatprep.subr.mxu0 0.0
        %389 = vmatpush1.msra.mxu0 %v254
        %390 = vmatprep.subr.mxu0 0.0
        %391 = vmatpush1.msra.mxu0 %v253
        %392 = vmatprep.subr.mxu0 0.0
        %393 = vmatpush1.msra.mxu0 %v252
        %394 = vmatprep.subr.mxu0 0.0
        %395 = vmatpush1.msra.mxu0 %v251
        %396 = vmatprep.subr.mxu0 0.0
        %397 = vmatpush1.msra.mxu0 %v250
        %398 = vmatprep.subr.mxu0 0.0
        %399 = vmatpush2.msra.mxu0 0.0
        %400 = vmatprep.subr.mxu0 0.0
        %401 = vmatpush2.msra.mxu0 0.0
        %402 = vmatprep.subr.mxu0 0.0
        %403 = vmatpush2.msra.mxu0 0.0
        %404 = vmatprep.subr.mxu0 0.0
        %405 = vmatpush2.msra.mxu0 0.0
        %406 = vmatprep.subr.mxu0 0.0
        %407 = vmatpush2.msra.mxu0 0.0
        %408 = vmatprep.subr.mxu0 0.0
        %409 = vmatpush2.msra.mxu0 0.0
        %410 = vmatprep.subr.mxu0 0.0
        %411 = vmatpush2.msra.mxu0 0.0
        %412 = vmatprep.subr.mxu0 0.0
        %413 = vmatpush2.msra.mxu0 0.0
        %414 = vmatprep.subr.mxu0 0.0
        %415 = vmatpush2.msra.mxu0 0.0
        %416 = vmatprep.subr.mxu0 0.0
        %417 = vmatpush2.msra.mxu0 0.0
        %418 = vmatprep.subr.mxu0 0.0
        %419 = vmatpush2.msra.mxu0 0.0
        %420 = vmatprep.subr.mxu0 0.0
        %421 = vmatpush2.msra.mxu0 0.0
        %422 = vmatprep.subr.mxu0 0.0
        %423 = vmatpush2.msra.mxu0 0.0
        %424 = vmatprep.subr.mxu0 0.0
        %425 = vmatpush2.msra.mxu0 0.0
        %426 = vmatprep.subr.mxu0 0.0
        %427 = vmatpush2.msra.mxu0 0.0
        %428 = vmatprep.subr.mxu0 0.0
        %429 = vmatpush2.msra.mxu0 0.0
        %430 = vmatprep.mubr.f32.mxu0 0.0
        %431 = vmatmul.mubr.f32.gmra.mxu0 %v220
        %v432 = vpop.f32.mrf.mxu0
        %v433 = vadd.f32 %v358, %v432
        %v434 = vpop.f32.mrf.mxu0
        %435 = vmatprep.mubr.f32.mxu0 0.0
        %436 = vmatmul.mubr.f32.gmra.mxu0 %v221
        %v437 = vpop.f32.mrf.mxu0
        %v438 = vadd.f32 %v363, %v437
        %v439 = vpop.f32.mrf.mxu0
        %440 = vdwg.mxu0
        %vm441 = vcmp.le.s32.totalorder %v247, 14
        %vm442 = vcmp.le.s32.totalorder %v248, 14
        %v443 = vrot.slane %v220, 1
        %v444 = vrot.slane %v221, 1
        %vm445 = vcmp.lt.s32.totalorder %v223, 7
        %v446 = vsel %vm445, %v443, %v444
        %v447 = vsel %vm445, %v444, %v443
        %v448 = vsel %vm441, %v446, 0.0
        %v449 = vsel %vm442, %v447, 0.0
        %s450 = scalar_lea.vmem [#allocation6], 256
        %v451 = vld [vmem:[%s450] sm:$0xff]
        %v452 = vld [vmem:[%s450 + $0x8] sm:$0xff]
        %v453 = vld [vmem:[%s450 + $0x10] sm:$0xff]
        %v454 = vld [vmem:[%s450 + $0x18] sm:$0xff]
        %v455 = vld [vmem:[%s450 + $0x20] sm:$0xff]
        %v456 = vld [vmem:[%s450 + $0x28] sm:$0xff]
        %v457 = vld [vmem:[%s450 + $0x30] sm:$0xff]
        %v458 = vld [vmem:[%s450 + $0x38] sm:$0xff]
        %v459 = vld [vmem:[%s450 + $0x40] sm:$0xff]
        %v460 = vld [vmem:[%s450 + $0x48] sm:$0xff]
        %v461 = vld [vmem:[%s450 + $0x50] sm:$0xff]
        %v462 = vld [vmem:[%s450 + $0x58] sm:$0xff]
        %v463 = vld [vmem:[%s450 + $0x60] sm:$0xff]
        %v464 = vld [vmem:[%s450 + $0x68] sm:$0xff]
        %v465 = vld [vmem:[%s450 + $0x70] sm:$0xff]
        %v466 = vld [vmem:[%s450 + $0x78] sm:$0xff]
        %467 = vmatprep.subr.mxu0 0.0
        %468 = vmatpush1.msra.mxu0 %v466
        %469 = vmatprep.subr.mxu0 0.0
        %470 = vmatpush1.msra.mxu0 %v465
        %471 = vmatprep.subr.mxu0 0.0
        %472 = vmatpush1.msra.mxu0 %v464
        %473 = vmatprep.subr.mxu0 0.0
        %474 = vmatpush1.msra.mxu0 %v463
        %475 = vmatprep.subr.mxu0 0.0
        %476 = vmatpush1.msra.mxu0 %v462
        %477 = vmatprep.subr.mxu0 0.0
        %478 = vmatpush1.msra.mxu0 %v461
        %479 = vmatprep.subr.mxu0 0.0
        %480 = vmatpush1.msra.mxu0 %v460
        %481 = vmatprep.subr.mxu0 0.0
        %482 = vmatpush1.msra.mxu0 %v459
        %483 = vmatprep.subr.mxu0 0.0
        %484 = vmatpush1.msra.mxu0 %v458
        %485 = vmatprep.subr.mxu0 0.0
        %486 = vmatpush1.msra.mxu0 %v457
        %487 = vmatprep.subr.mxu0 0.0
        %488 = vmatpush1.msra.mxu0 %v456
        %489 = vmatprep.subr.mxu0 0.0
        %490 = vmatpush1.msra.mxu0 %v455
        %491 = vmatprep.subr.mxu0 0.0
        %492 = vmatpush1.msra.mxu0 %v454
        %493 = vmatprep.subr.mxu0 0.0
        %494 = vmatpush1.msra.mxu0 %v453
        %495 = vmatprep.subr.mxu0 0.0
        %496 = vmatpush1.msra.mxu0 %v452
        %497 = vmatprep.subr.mxu0 0.0
        %498 = vmatpush1.msra.mxu0 %v451
        %499 = vmatprep.subr.mxu0 0.0
        %500 = vmatpush2.msra.mxu0 0.0
        %501 = vmatprep.subr.mxu0 0.0
        %502 = vmatpush2.msra.mxu0 0.0
        %503 = vmatprep.subr.mxu0 0.0
        %504 = vmatpush2.msra.mxu0 0.0
        %505 = vmatprep.subr.mxu0 0.0
        %506 = vmatpush2.msra.mxu0 0.0
        %507 = vmatprep.subr.mxu0 0.0
        %508 = vmatpush2.msra.mxu0 0.0
        %509 = vmatprep.subr.mxu0 0.0
        %510 = vmatpush2.msra.mxu0 0.0
        %511 = vmatprep.subr.mxu0 0.0
        %512 = vmatpush2.msra.mxu0 0.0
        %513 = vmatprep.subr.mxu0 0.0
        %514 = vmatpush2.msra.mxu0 0.0
        %515 = vmatprep.subr.mxu0 0.0
        %516 = vmatpush2.msra.mxu0 0.0
        %517 = vmatprep.subr.mxu0 0.0
        %518 = vmatpush2.msra.mxu0 0.0
        %519 = vmatprep.subr.mxu0 0.0
        %520 = vmatpush2.msra.mxu0 0.0
        %521 = vmatprep.subr.mxu0 0.0
        %522 = vmatpush2.msra.mxu0 0.0
        %523 = vmatprep.subr.mxu0 0.0
        %524 = vmatpush2.msra.mxu0 0.0
        %525 = vmatprep.subr.mxu0 0.0
        %526 = vmatpush2.msra.mxu0 0.0
        %527 = vmatprep.subr.mxu0 0.0
        %528 = vmatpush2.msra.mxu0 0.0
        %529 = vmatprep.subr.mxu0 0.0
        %530 = vmatpush2.msra.mxu0 0.0
        %531 = vmatprep.mubr.f32.mxu0 0.0
        %532 = vmatmul.mubr.f32.gmra.mxu0 %v448
        %v533 = vpop.f32.mrf.mxu0
        %v534 = vadd.f32 0.0, %v533
        %v535 = vpop.f32.mrf.mxu0
        %536 = vmatprep.mubr.f32.mxu0 0.0
        %537 = vmatmul.mubr.f32.gmra.mxu0 %v449
        %v538 = vpop.f32.mrf.mxu0
        %v539 = vadd.f32 0.0, %v538
        %v540 = vpop.f32.mrf.mxu0
        %541 = vdwg.mxu0
        %v542 = vadd.f32 %v433, %v534
        %v543 = vadd.f32 %v438, %v539
        %s544 = sld [smem:[#allocation8]]
        %v545 = vstv %s544
        %v546 = vadd.f32 %v542, %v545
        %v547 = vadd.f32 %v543, %v545
        %s548 = sld [smem:[#allocation8 + $0x1]]
        %v549 = vsub.f32 0.0, %v546
        %v550 = vsub.f32 0.0, %v547
        %v551 = vmul.f32 %v549, 1.442695
        %v552 = vpow.pop %v551
        %v553 = vmul.f32 %v550, 1.442695
        %v554 = vpow.pop %v553
        %v555 = vadd.f32 %v552, 1.0
        %v556 = vadd.f32 %v554, 1.0
        %v557 = vrcp.pop %v555
        %v558 = vrcp.pop %v556
        %v559 = vstv %s548
        %v560 = vmul.f32 %v559, %v557
        %v561 = vmul.f32 %v559, %v558
        %v562 = vadd.f32 %v560, 1.0
        %v563 = vadd.f32 %v561, 1.0
        %v564 = vmul.f32 %v220, %v562
        %v565 = vmul.f32 %v221, %v563
        %566 = vst [vmem:[%s217] sm:$0xff] %v564
        %567 = vst [vmem:[%s217 + $0x8] sm:$0xff] %v565
        %s568 = sand.u32 %s98, 1
        %s569 = scalar_lea.sflag [#allocation4], %s568
        %s570 = sand.u32 %s98, 1
        %s571 = smul.addr %s570, 16
        %s572 = scalar_lea.vmem [#allocation9], %s571
        // Predicated region
        $region45: #{tpu_custom_call.1} parent=31 // pred_check
          %p573 = pneg %p108
        $region46: #{tpu_custom_call.1} parent=31 // pred_check_branch
          %575 = sbr.rel (%p573) target = $region48
        $region47: #{tpu_custom_call.1} parent=31 // pred_region
          %s576 = smul.u32 2, %s22
          %s578 = ssub.s32 256, 256
          %579 = vsyncadd %s569, %s578
          %s580 = smul.addr %s576, 128
          %s581 = scalar_lea.hbm %s3, %s580
          %s582 = sshll.u32 %s572, 4
          %s583 = int_to_ptr.vmem [resolvable:$true] %s582
          %588 = dma.vmem_to_hbm [thread:$0]  %s583, 256, %s581, %s569, 128, 128, 8
        $region48: #{tpu_custom_call.1} parent=31 // pred_fallthru
          _
      $region32: #{tpu_custom_call.1} parent=5 // pred_fallthru
        _
      %p589 = scmp.le.s32.totalorder 2, %s17
      // Predicated region
      $region49: #{tpu_custom_call.1} parent=5 // pred_check
        %p590 = pneg %p589
      $region50: #{tpu_custom_call.1} parent=5 // pred_check_branch
        %592 = sbr.rel (%p590) target = $region52
      $region51: #{tpu_custom_call.1} parent=5 // pred_region
        %s593 = ssub.s32 %s17, 2
        // Predicated region
        $region53: #{tpu_custom_call.1} parent=51 // pred_check
          %p594 = pneg %p114
        $region54: #{tpu_custom_call.1} parent=51 // pred_check_branch
          %596 = sbr.rel (%p594) target = $region56
        $region55: #{tpu_custom_call.1} parent=51 // pred_region
          %s597 = sand.u32 %s99, 1
          %s598 = scalar_lea.sflag [#allocation4], %s597
          %s599 = sand.u32 %s99, 1
          %s600 = smul.addr %s599, 16
          %s601 = scalar_lea.vmem [#allocation9], %s600
          %602 = dma.done %s598, 256
        $region56: #{tpu_custom_call.1} parent=51 // pred_fallthru
          _
      $region52: #{tpu_custom_call.1} parent=5 // pred_fallthru
        _
    $region6: #{tpu_custom_call.1} parent=1 // loop_footer
      %s21 = sadd.s32 1, %s17
    $region7: #{tpu_custom_call.1} parent=1 // loop_footer_branch
      %16 = sbr.rel target = $region3
    $region8: #{tpu_custom_call.1} parent=1 // loop_exit
      _
    %603 = vsyncpa [#allocation3], 1
    %s604 = scalar_lea.sflag [#allocation3], 1
    %605 = vsyncpa %s604, 1
    %606 = vsyncpa [#allocation7], 1
    %607 = vsyncpa [#allocation4], 1
    %s608 = scalar_lea.sflag [#allocation4], 1
    %609 = vsyncpa %s608, 1
    %610 = vsyncpa [#allocation5], 1
    %s611 = scalar_lea.sflag [#allocation5], 1
    %612 = vsyncpa %s611, 1

</llo_original>
